<compile_context>
chip_gen: v7x
topology: tpu7x:2x2x1
jax: 0.10.0
libtpu: 0.0.40
codegen_flags: <defaults>
</compile_context>

<pallas_src>
import functools

import numpy as np
import jax
import jax.numpy as jnp
from jax.experimental import pallas as pl
from jax.experimental.pallas import tpu as pltpu

LANE = 128  # pad feature/lane dims to this width for lane-dense layouts


# ----------------------------------------------------------------------------
# Fused Pallas kernel
# ----------------------------------------------------------------------------
def _make_fused_kernel(num_classes):
    """Returns kernel computing the whole GCN forward for one graph.

    Inputs (all VMEM-resident, f32):
      a     : [N, N]       symmetric-normalized adjacency (A_hat)
      x     : [N, F_in]    node features
      w1    : [F_in, LANE] (hidden cols zero-padded to LANE)
      b1    : [1, LANE]
      w2,w3 : [LANE, LANE]
      b2,b3 : [1, LANE]
      wc    : [LANE, LANE] (classifier, classes zero-padded to LANE)
      bc    : [1, LANE]
    Output:
      o     : [1, LANE]    log_softmax over the first `num_classes` lanes,
                           zeros elsewhere (sliced outside the kernel).
    """

    def kernel(a_ref, x_ref, w1_ref, b1_ref, w2_ref, b2_ref,
               w3_ref, b3_ref, wc_ref, bc_ref, o_ref):
        a = a_ref[...]                                     # loaded once, reused 3x

        def conv(h_in, w_ref, b_ref):
            h = jnp.dot(h_in, w_ref[...], preferred_element_type=jnp.float32)
            h = jnp.dot(a, h, preferred_element_type=jnp.float32)
            return jnp.maximum(h + b_ref[...], 0.0)        # bias + ReLU fused

        h = conv(x_ref[...], w1_ref, b1_ref)               # [N, LANE]
        h = conv(h, w2_ref, b2_ref)
        h = conv(h, w3_ref, b3_ref)

        # mean over nodes: cross-sublane reduce on the XLU (no extra matmul)
        m = jnp.mean(h, axis=0, keepdims=True)             # [1, LANE]

        logits = jnp.dot(m, wc_ref[...], preferred_element_type=jnp.float32)
        logits = logits + bc_ref[...]                      # [1, LANE]

        # numerically-stable log_softmax restricted to the real classes
        lane = jax.lax.broadcasted_iota(jnp.int32, logits.shape, 1)
        valid = lane < num_classes
        masked = jnp.where(valid, logits, jnp.float32(-1e30))
        mx = jnp.max(masked, axis=-1, keepdims=True)
        z = masked - mx
        e = jnp.where(valid, jnp.exp(z), 0.0)
        lse = jnp.log(jnp.sum(e, axis=-1, keepdims=True))
        o_ref[...] = jnp.where(valid, z - lse, 0.0)        # lane-dense store

    return kernel


def gcn_fused_call(a_hat, x, pp, num_classes):
    """Single pallas_call for the whole forward; returns [1, num_classes]."""
    vmem = pl.BlockSpec(memory_space=pltpu.MemorySpace.VMEM)
    out_pad = pl.pallas_call(
        _make_fused_kernel(num_classes),
        out_shape=jax.ShapeDtypeStruct((1, LANE), jnp.float32),
        in_specs=[vmem] * 10,
        out_specs=vmem,
    )(a_hat, x,
      pp["w1"], pp["b1"], pp["w2"], pp["b2"],
      pp["w3"], pp["b3"], pp["wc"], pp["bc"])
    return out_pad[:, :num_classes]


# ----------------------------------------------------------------------------
# Host-side precompute: dense normalized adjacency (no XLA scatter, done once)
# ----------------------------------------------------------------------------
def normalized_adjacency(edge_index, num_nodes):
    ei = np.asarray(edge_index)
    a = np.zeros((num_nodes, num_nodes), np.float32)
    a[ei[0], ei[1]] = 1.0
    a = np.maximum(a, a.T)                                 # undirected
    a = a + np.eye(num_nodes, dtype=np.float32)            # self loops
    d_inv_sqrt = 1.0 / np.sqrt(a.sum(axis=1))              # deg >= 1 (self loops)
    return jnp.asarray(a * d_inv_sqrt[:, None] * d_inv_sqrt[None, :])


# ----------------------------------------------------------------------------
# Parameters: init (PyTorch-like) + one-time lane padding
# ----------------------------------------------------------------------------
def init_params(key, input_dim=5, hidden_dim=64, output_dim=2):
    ks = jax.random.split(key, 8)

    def glorot(k, shape):
        fan_in, fan_out = shape
        lim = jnp.sqrt(6.0 / (fan_in + fan_out))
        return jax.random.uniform(k, shape, jnp.float32, -lim, lim)

    return {
        "w1": glorot(ks[0], (input_dim, hidden_dim)),
        "b1": jnp.zeros((hidden_dim,), jnp.float32),
        "w2": glorot(ks[1], (hidden_dim, hidden_dim)),
        "b2": jnp.zeros((hidden_dim,), jnp.float32),
        "w3": glorot(ks[2], (hidden_dim, hidden_dim)),
        "b3": jnp.zeros((hidden_dim,), jnp.float32),
        # nn.Linear weight is [out, in]; store transposed [in, out] for m @ W
        "wc": glorot(ks[3], (hidden_dim, output_dim)),
        "bc": jax.random.uniform(ks[4], (output_dim,), jnp.float32, -0.1, 0.1),
    }


def _pad_to(a, shape):
    pads = [(0, t - s) for s, t in zip(a.shape, shape)]
    return jnp.pad(a, pads)


def prepare_params(params):
    """Zero-pad every weight/bias to LANE-wide once (hoisted out of forward)."""
    input_dim = params["w1"].shape[0]
    return {
        "w1": _pad_to(params["w1"], (input_dim, LANE)),
        "b1": _pad_to(params["b1"].reshape(1, -1), (1, LANE)),
        "w2": _pad_to(params["w2"], (LANE, LANE)),
        "b2": _pad_to(params["b2"].reshape(1, -1), (1, LANE)),
        "w3": _pad_to(params["w3"], (LANE, LANE)),
        "b3": _pad_to(params["b3"].reshape(1, -1), (1, LANE)),
        "wc": _pad_to(params["wc"], (LANE, LANE)),
        "bc": _pad_to(params["bc"].reshape(1, -1), (1, LANE)),
    }


# ----------------------------------------------------------------------------
# Forward (one kernel launch)
# ----------------------------------------------------------------------------
@functools.partial(jax.jit, static_argnames=("num_classes",))
def gcn_forward(prepped_params, a_hat, x, num_classes=2):
    return gcn_fused_call(a_hat, x, prepped_params, num_classes)


# ----------------------------------------------------------------------------
if __name__ == "__main__":
    key = jax.random.PRNGKey(0)
    k_feat, k_edge, k_param = jax.random.split(key, 3)

    num_nodes, input_dim, hidden_dim, output_dim = 16, 5, 64, 2

    # node features
    x = jax.random.normal(k_feat, (num_nodes, input_dim), jnp.float32)

    # deterministic edges (ring plus a few chords)
    src = np.arange(num_nodes, dtype=np.int32)
    dst = (src + 1) % num_nodes
    extra_src = np.array([0, 2, 5, 7, 9, 11], dtype=np.int32)
    extra_dst = np.array([8, 12, 14, 3, 1, 6], dtype=np.int32)
    edge_index = np.stack(
        [np.concatenate([src, extra_src]), np.concatenate([dst, extra_dst])]
    )

    # hoisted one-time precompute: adjacency + padded params
    a_hat = normalized_adjacency(edge_index, num_nodes)
    params = init_params(k_param, input_dim, hidden_dim, output_dim)
    prepped = prepare_params(params)

    out = gcn_forward(prepped, a_hat, x, num_classes=output_dim)
    out = jax.block_until_ready(out)

    assert out.shape == (1, output_dim)
    # log_softmax sanity: exp(out) sums to 1
    assert abs(float(jnp.sum(jnp.exp(out))) - 1.0) < 1e-4

    print("KERNEL_OK")
</pallas_src>

<mosaic_0001>
module attributes {stable_mosaic.version = 11 : i64} {
  func.func @kernel(%arg0: memref<16x16xf32, #tpu.memory_space<vmem>>, %arg1: memref<16x5xf32, #tpu.memory_space<vmem>>, %arg2: memref<5x128xf32, #tpu.memory_space<vmem>>, %arg3: memref<1x128xf32, #tpu.memory_space<vmem>>, %arg4: memref<128x128xf32, #tpu.memory_space<vmem>>, %arg5: memref<1x128xf32, #tpu.memory_space<vmem>>, %arg6: memref<128x128xf32, #tpu.memory_space<vmem>>, %arg7: memref<1x128xf32, #tpu.memory_space<vmem>>, %arg8: memref<128x128xf32, #tpu.memory_space<vmem>>, %arg9: memref<1x128xf32, #tpu.memory_space<vmem>>, %arg10: memref<1x128xf32, #tpu.memory_space<vmem>>) attributes {dimension_semantics = [], scalar_prefetch = 0 : i64, scratch_operands = 0 : i64, tpu.core_type = #tpu.core_type<tc>} {
    %c0 = arith.constant 0 : index
    %c0_0 = arith.constant 0 : index
    %0 = vector.load %arg0[%c0, %c0_0] : memref<16x16xf32, #tpu.memory_space<vmem>>, vector<16x16xf32>
    %c0_1 = arith.constant 0 : index
    %c0_2 = arith.constant 0 : index
    %1 = vector.load %arg1[%c0_1, %c0_2] : memref<16x5xf32, #tpu.memory_space<vmem>>, vector<16x5xf32>
    %c0_3 = arith.constant 0 : index
    %c0_4 = arith.constant 0 : index
    %2 = vector.load %arg2[%c0_3, %c0_4] : memref<5x128xf32, #tpu.memory_space<vmem>>, vector<5x128xf32>
    %cst = arith.constant dense<0.000000e+00> : vector<16x128xf32>
    %3 = tpu.matmul %1, %2, %cst {dimension_numbers = #tpu.dot_dimension_numbers<[1], [0], [0], [1], [0, 0, 1, 1], [], []>} : vector<16x5xf32>, vector<5x128xf32>, vector<16x128xf32> -> vector<16x128xf32>
    %cst_5 = arith.constant dense<0.000000e+00> : vector<16x128xf32>
    %4 = tpu.matmul %0, %3, %cst_5 {dimension_numbers = #tpu.dot_dimension_numbers<[1], [0], [0], [1], [0, 0, 1, 1], [], []>} : vector<16x16xf32>, vector<16x128xf32>, vector<16x128xf32> -> vector<16x128xf32>
    %c0_6 = arith.constant 0 : index
    %c0_7 = arith.constant 0 : index
    %5 = vector.load %arg3[%c0_6, %c0_7] : memref<1x128xf32, #tpu.memory_space<vmem>>, vector<1x128xf32>
    %6 = vector.broadcast %5 : vector<1x128xf32> to vector<16x128xf32>
    %7 = arith.addf %4, %6 : vector<16x128xf32>
    %cst_8 = arith.constant 0.000000e+00 : f32
    %8 = vector.broadcast %cst_8 : f32 to vector<16x128xf32>
    %9 = arith.maximumf %7, %8 : vector<16x128xf32>
    %c0_9 = arith.constant 0 : index
    %c0_10 = arith.constant 0 : index
    %10 = vector.load %arg4[%c0_9, %c0_10] : memref<128x128xf32, #tpu.memory_space<vmem>>, vector<128x128xf32>
    %cst_11 = arith.constant dense<0.000000e+00> : vector<16x128xf32>
    %11 = tpu.matmul %9, %10, %cst_11 {dimension_numbers = #tpu.dot_dimension_numbers<[1], [0], [0], [1], [0, 0, 1, 1], [], []>} : vector<16x128xf32>, vector<128x128xf32>, vector<16x128xf32> -> vector<16x128xf32>
    %cst_12 = arith.constant dense<0.000000e+00> : vector<16x128xf32>
    %12 = tpu.matmul %0, %11, %cst_12 {dimension_numbers = #tpu.dot_dimension_numbers<[1], [0], [0], [1], [0, 0, 1, 1], [], []>} : vector<16x16xf32>, vector<16x128xf32>, vector<16x128xf32> -> vector<16x128xf32>
    %c0_13 = arith.constant 0 : index
    %c0_14 = arith.constant 0 : index
    %13 = vector.load %arg5[%c0_13, %c0_14] : memref<1x128xf32, #tpu.memory_space<vmem>>, vector<1x128xf32>
    %14 = vector.broadcast %13 : vector<1x128xf32> to vector<16x128xf32>
    %15 = arith.addf %12, %14 : vector<16x128xf32>
    %cst_15 = arith.constant 0.000000e+00 : f32
    %16 = vector.broadcast %cst_15 : f32 to vector<16x128xf32>
    %17 = arith.maximumf %15, %16 : vector<16x128xf32>
    %c0_16 = arith.constant 0 : index
    %c0_17 = arith.constant 0 : index
    %18 = vector.load %arg6[%c0_16, %c0_17] : memref<128x128xf32, #tpu.memory_space<vmem>>, vector<128x128xf32>
    %cst_18 = arith.constant dense<0.000000e+00> : vector<16x128xf32>
    %19 = tpu.matmul %17, %18, %cst_18 {dimension_numbers = #tpu.dot_dimension_numbers<[1], [0], [0], [1], [0, 0, 1, 1], [], []>} : vector<16x128xf32>, vector<128x128xf32>, vector<16x128xf32> -> vector<16x128xf32>
    %cst_19 = arith.constant dense<0.000000e+00> : vector<16x128xf32>
    %20 = tpu.matmul %0, %19, %cst_19 {dimension_numbers = #tpu.dot_dimension_numbers<[1], [0], [0], [1], [0, 0, 1, 1], [], []>} : vector<16x16xf32>, vector<16x128xf32>, vector<16x128xf32> -> vector<16x128xf32>
    %c0_20 = arith.constant 0 : index
    %c0_21 = arith.constant 0 : index
    %21 = vector.load %arg7[%c0_20, %c0_21] : memref<1x128xf32, #tpu.memory_space<vmem>>, vector<1x128xf32>
    %22 = vector.broadcast %21 : vector<1x128xf32> to vector<16x128xf32>
    %23 = arith.addf %20, %22 : vector<16x128xf32>
    %cst_22 = arith.constant 0.000000e+00 : f32
    %24 = vector.broadcast %cst_22 : f32 to vector<16x128xf32>
    %25 = arith.maximumf %23, %24 : vector<16x128xf32>
    %cst_23 = arith.constant dense<0.000000e+00> : vector<128xf32>
    %26 = vector.multi_reduction <add>, %25, %cst_23 [0] : vector<16x128xf32> to vector<128xf32>
    %27 = vector.shape_cast %26 : vector<128xf32> to vector<1x128xf32>
    %cst_24 = arith.constant 1.600000e+01 : f32
    %28 = vector.broadcast %cst_24 : f32 to vector<1x128xf32>
    %29 = arith.divf %27, %28 : vector<1x128xf32>
    %c0_25 = arith.constant 0 : index
    %c0_26 = arith.constant 0 : index
    %30 = vector.load %arg8[%c0_25, %c0_26] : memref<128x128xf32, #tpu.memory_space<vmem>>, vector<128x128xf32>
    %cst_27 = arith.constant dense<0.000000e+00> : vector<1x128xf32>
    %31 = tpu.matmul %29, %30, %cst_27 {dimension_numbers = #tpu.dot_dimension_numbers<[1], [0], [0], [1], [0, 0, 1, 1], [], []>} : vector<1x128xf32>, vector<128x128xf32>, vector<1x128xf32> -> vector<1x128xf32>
    %c0_28 = arith.constant 0 : index
    %c0_29 = arith.constant 0 : index
    %32 = vector.load %arg9[%c0_28, %c0_29] : memref<1x128xf32, #tpu.memory_space<vmem>>, vector<1x128xf32>
    %33 = arith.addf %31, %32 : vector<1x128xf32>
    %34 = tpu.iota {dimensions = array<i32: 1>} : vector<1x128xi32>
    %c2_i32 = arith.constant 2 : i32
    %35 = vector.broadcast %c2_i32 : i32 to vector<1x128xi32>
    %36 = arith.cmpi slt, %34, %35 : vector<1x128xi32>
    %cst_30 = arith.constant -1.000000e+30 : f32
    %37 = vector.broadcast %cst_30 : f32 to vector<1x128xf32>
    %38 = arith.select %36, %33, %37 : vector<1x128xi1>, vector<1x128xf32>
    %cst_31 = arith.constant dense<0xFF800000> : vector<1xf32>
    %39 = vector.multi_reduction <maximumf>, %38, %cst_31 [1] : vector<1x128xf32> to vector<1xf32>
    %40 = vector.shape_cast %39 : vector<1xf32> to vector<1x1xf32>
    %41 = vector.broadcast %40 : vector<1x1xf32> to vector<1x128xf32>
    %42 = arith.subf %38, %41 : vector<1x128xf32>
    %43 = math.exp %42 : vector<1x128xf32>
    %cst_32 = arith.constant 0.000000e+00 : f32
    %44 = vector.broadcast %cst_32 : f32 to vector<1x128xf32>
    %45 = arith.select %36, %43, %44 : vector<1x128xi1>, vector<1x128xf32>
    %cst_33 = arith.constant dense<0.000000e+00> : vector<1xf32>
    %46 = vector.multi_reduction <add>, %45, %cst_33 [1] : vector<1x128xf32> to vector<1xf32>
    %47 = vector.shape_cast %46 : vector<1xf32> to vector<1x1xf32>
    %48 = math.log %47 : vector<1x1xf32>
    %49 = vector.broadcast %48 : vector<1x1xf32> to vector<1x128xf32>
    %50 = arith.subf %42, %49 : vector<1x128xf32>
    %cst_34 = arith.constant 0.000000e+00 : f32
    %51 = vector.broadcast %cst_34 : f32 to vector<1x128xf32>
    %52 = arith.select %36, %50, %51 : vector<1x128xi1>, vector<1x128xf32>
    %c0_35 = arith.constant 0 : index
    %c0_36 = arith.constant 0 : index
    %53 = vector.load %arg10[%c0_35, %c0_36] : memref<1x128xf32, #tpu.memory_space<vmem>>, vector<1x128xf32>
    tpu.vector_store %arg10[%c0_35, %c0_36], %52 {strides = array<i32>} : memref<1x128xf32, #tpu.memory_space<vmem>>, vector<1x128xf32>,
    return
  }
}

</mosaic_0001>

<llo_original>
// kernel: gcn_forward.1
$region0: #{gcn_forward.1}
  #allocation0 [shape = 'u32[]', space=smem, size = 0x4, offset = 0x4, fixed_abs, tag = 'smem constant byte address 0x4 - core index']
  #allocation1 [shape = 'u32[144,128]{1,0:T(1,128)}', space=vmem, size = 0x12000, scoped, tag = 'internal scratch']
  %s0 = inlined_call_operand.vmem [shape: f32[16,16], index: 0, kind: input, shape index: {}]
  %s1 = inlined_call_operand.vmem [shape: f32[16,5], index: 1, kind: input, shape index: {}]
  %s2 = inlined_call_operand.vmem [shape: f32[5,128], index: 2, kind: input, shape index: {}]
  %s3 = inlined_call_operand.vmem [shape: f32[1,128], index: 3, kind: input, shape index: {}]
  %s4 = inlined_call_operand.hbm [shape: f32[128,128], index: 4, kind: input, shape index: {}]
  %s5 = inlined_call_operand.vmem [shape: f32[1,128], index: 5, kind: input, shape index: {}]
  %s6 = inlined_call_operand.hbm [shape: f32[128,128], index: 6, kind: input, shape index: {}]
  %s7 = inlined_call_operand.vmem [shape: f32[1,128], index: 7, kind: input, shape index: {}]
  %s8 = inlined_call_operand.hbm [shape: f32[128,128], index: 8, kind: input, shape index: {}]
  %s9 = inlined_call_operand.vmem [shape: f32[1,128], index: 9, kind: input, shape index: {}]
  %s10 = inlined_call_operand.hbm [shape: f32[1,128], index: 10, kind: output, shape index: {}]
  %s11 = sld [smem:[#allocation0]]
  $region62: #{gcn_forward.1} parent=0
    _
  %s13 = ssub.s32 1, %s11
  %s14 = scalar_select 0, %s13, %s11
  $region1: #{gcn_forward.1} parent=0
    #allocation2 [shape = 'u8[65536]{0}', space=vmem, size = 0x10000, scoped, tag = 'input window, operand 4, single buffered']
    #allocation3 [shape = 's32[1]{0}', space=sflag, size = 0x4, scoped, tag = 'scoped memory for gcn_forward.1']
    #allocation4 [shape = 's32[1]{0}', space=sflag, size = 0x4, scoped, tag = 'scoped memory for gcn_forward.1']
    #allocation5 [shape = 'u8[65536]{0}', space=vmem, size = 0x10000, scoped, tag = 'input window, operand 6, single buffered']
    #allocation6 [shape = 's32[1]{0}', space=sflag, size = 0x4, scoped, tag = 'scoped memory for gcn_forward.1']
    #allocation7 [shape = 'u8[65536]{0}', space=vmem, size = 0x10000, scoped, tag = 'input window, operand 8, single buffered']
    #allocation8 [shape = 'u8[512]{0}', space=vmem, size = 0x400, scoped, tag = 'output window, operand 0, single buffered']
    %15 = vsyncpa [#allocation3], 0
    %16 = vsyncpa [#allocation6], 0
    %17 = vsyncpa [#allocation4], 0
    // Predicated region
    $region2: #{gcn_forward.1} parent=1 // pred_check
      _
    $region3: #{gcn_forward.1} parent=1 // pred_check_branch
      %19 = sbr.rel (0) target = $region5
    $region4: #{gcn_forward.1} parent=1 // pred_region
      _
    $region5: #{gcn_forward.1} parent=1 // pred_fallthru
      _
    // Predicated region
    $region6: #{gcn_forward.1} parent=1 // pred_check
      _
    $region7: #{gcn_forward.1} parent=1 // pred_check_branch
      %21 = sbr.rel (0) target = $region9
    $region8: #{gcn_forward.1} parent=1 // pred_region
      _
    $region9: #{gcn_forward.1} parent=1 // pred_fallthru
      _
    // Predicated region
    $region10: #{gcn_forward.1} parent=1 // pred_check
      _
    $region11: #{gcn_forward.1} parent=1 // pred_check_branch
      %23 = sbr.rel (0) target = $region13
    $region12: #{gcn_forward.1} parent=1 // pred_region
      _
    $region13: #{gcn_forward.1} parent=1 // pred_fallthru
      _
    // Predicated region
    $region14: #{gcn_forward.1} parent=1 // pred_check
      _
    $region15: #{gcn_forward.1} parent=1 // pred_check_branch
      %25 = sbr.rel (0) target = $region17
    $region16: #{gcn_forward.1} parent=1 // pred_region
      _
    $region17: #{gcn_forward.1} parent=1 // pred_fallthru
      _
    // Predicated region
    $region18: #{gcn_forward.1} parent=1 // pred_check
      _
    $region19: #{gcn_forward.1} parent=1 // pred_check_branch
      %27 = sbr.rel (0) target = $region21
    $region20: #{gcn_forward.1} parent=1 // pred_region
      %s29 = ssub.s32 2048, 2048
      %30 = vsyncadd [#allocation3], %s29
      %s31 = sshll.u32 [#allocation2], 4
      %s32 = int_to_ptr.vmem [resolvable:$true] %s31
      %37 = dma.hbm_to_vmem [thread:$0]  %s4, 2048, %s32, [#allocation3], 128, 128, 8
    $region21: #{gcn_forward.1} parent=1 // pred_fallthru
      _
    // Predicated region
    $region22: #{gcn_forward.1} parent=1 // pred_check
      _
    $region23: #{gcn_forward.1} parent=1 // pred_check_branch
      %39 = sbr.rel (0) target = $region25
    $region24: #{gcn_forward.1} parent=1 // pred_region
      _
    $region25: #{gcn_forward.1} parent=1 // pred_fallthru
      _
    // Predicated region
    $region26: #{gcn_forward.1} parent=1 // pred_check
      _
    $region27: #{gcn_forward.1} parent=1 // pred_check_branch
      %41 = sbr.rel (0) target = $region29
    $region28: #{gcn_forward.1} parent=1 // pred_region
      %s43 = ssub.s32 2048, 2048
      %44 = vsyncadd [#allocation6], %s43
      %s45 = sshll.u32 [#allocation5], 4
      %s46 = int_to_ptr.vmem [resolvable:$true] %s45
      %51 = dma.hbm_to_vmem [thread:$0]  %s6, 2048, %s46, [#allocation6], 128, 128, 8
    $region29: #{gcn_forward.1} parent=1 // pred_fallthru
      _
    // Predicated region
    $region30: #{gcn_forward.1} parent=1 // pred_check
      _
    $region31: #{gcn_forward.1} parent=1 // pred_check_branch
      %53 = sbr.rel (0) target = $region33
    $region32: #{gcn_forward.1} parent=1 // pred_region
      _
    $region33: #{gcn_forward.1} parent=1 // pred_fallthru
      _
    // Predicated region
    $region34: #{gcn_forward.1} parent=1 // pred_check
      _
    $region35: #{gcn_forward.1} parent=1 // pred_check_branch
      %55 = sbr.rel (0) target = $region37
    $region36: #{gcn_forward.1} parent=1 // pred_region
      %s57 = ssub.s32 2048, 2048
      %58 = vsyncadd [#allocation6], %s57
      %s59 = sshll.u32 [#allocation7], 4
      %s60 = int_to_ptr.vmem [resolvable:$true] %s59
      %65 = dma.hbm_to_vmem [thread:$0]  %s8, 2048, %s60, [#allocation6], 128, 128, 8
    $region37: #{gcn_forward.1} parent=1 // pred_fallthru
      _
    // Predicated region
    $region38: #{gcn_forward.1} parent=1 // pred_check
      _
    $region39: #{gcn_forward.1} parent=1 // pred_check_branch
      %67 = sbr.rel (0) target = $region41
    $region40: #{gcn_forward.1} parent=1 // pred_region
      _
    $region41: #{gcn_forward.1} parent=1 // pred_fallthru
      _
    // Predicated region
    $region42: #{gcn_forward.1} parent=1 // pred_check
      _
    $region43: #{gcn_forward.1} parent=1 // pred_check_branch
      %69 = sbr.rel (0) target = $region45
    $region44: #{gcn_forward.1} parent=1 // pred_region
      %70 = dma.done [#allocation3], 2048
    $region45: #{gcn_forward.1} parent=1 // pred_fallthru
      _
    // Predicated region
    $region46: #{gcn_forward.1} parent=1 // pred_check
      _
    $region47: #{gcn_forward.1} parent=1 // pred_check_branch
      %72 = sbr.rel (0) target = $region49
    $region48: #{gcn_forward.1} parent=1 // pred_region
      %73 = dma.done [#allocation6], 2048
    $region49: #{gcn_forward.1} parent=1 // pred_fallthru
      _
    // Predicated region
    $region50: #{gcn_forward.1} parent=1 // pred_check
      _
    $region51: #{gcn_forward.1} parent=1 // pred_check_branch
      %75 = sbr.rel (0) target = $region53
    $region52: #{gcn_forward.1} parent=1 // pred_region
      %76 = dma.done [#allocation6], 2048
    $region53: #{gcn_forward.1} parent=1 // pred_fallthru
      _
    %v77 = vld [vmem:[%s0] sm:$0xff]
    %v78 = vld [vmem:[%s0 + $0x8] sm:$0xff]
    %v79 = vld [vmem:[%s1] sm:$0xff]
    %v80 = vld [vmem:[%s1 + $0x8] sm:$0xff]
    %v81 = vld [vmem:[%s2] sm:$0x1f]
    %vm82 = vcmask 39936
    %v84 = vsel %vm82, %v79, 0
    %v87 = vsel %vm82, %v80, 0
    %vm89 = vcmask 1044480
    %v91 = vsel %vm89, %v81, 0
    %93 = vmatprep.subr.mxu0 0.0
    %94 = vmatpush1.msra.mxu0 %v91
    %95 = vmatprep.subr.mxu0 0.0
    %96 = vmatpush1.msra.mxu0 0.0
    %97 = vmatprep.subr.mxu0 0.0
    %98 = vmatpush1.msra.mxu0 0.0
    %99 = vmatprep.subr.mxu0 0.0
    %100 = vmatpush1.msra.mxu0 0.0
    %101 = vmatprep.subr.mxu0 0.0
    %102 = vmatpush1.msra.mxu0 0.0
    %103 = vmatprep.subr.mxu0 0.0
    %104 = vmatpush1.msra.mxu0 0.0
    %105 = vmatprep.subr.mxu0 0.0
    %106 = vmatpush1.msra.mxu0 0.0
    %107 = vmatprep.subr.mxu0 0.0
    %108 = vmatpush1.msra.mxu0 0.0
    %109 = vmatprep.subr.mxu0 0.0
    %110 = vmatpush1.msra.mxu0 0.0
    %111 = vmatprep.subr.mxu0 0.0
    %112 = vmatpush1.msra.mxu0 0.0
    %113 = vmatprep.subr.mxu0 0.0
    %114 = vmatpush1.msra.mxu0 0.0
    %115 = vmatprep.subr.mxu0 0.0
    %116 = vmatpush1.msra.mxu0 0.0
    %117 = vmatprep.subr.mxu0 0.0
    %118 = vmatpush1.msra.mxu0 0.0
    %119 = vmatprep.subr.mxu0 0.0
    %120 = vmatpush1.msra.mxu0 0.0
    %121 = vmatprep.subr.mxu0 0.0
    %122 = vmatpush1.msra.mxu0 0.0
    %123 = vmatprep.subr.mxu0 0.0
    %124 = vmatpush1.msra.mxu0 0.0
    %125 = vmatprep.subr.mxu0 0.0
    %126 = vmatpush1.msra.mxu0 0.0
    %127 = vmatprep.subr.mxu0 0.0
    %128 = vmatpush1.msra.mxu0 0.0
    %129 = vmatprep.subr.mxu0 0.0
    %130 = vmatpush1.msra.mxu0 0.0
    %131 = vmatprep.subr.mxu0 0.0
    %132 = vmatpush1.msra.mxu0 0.0
    %133 = vmatprep.subr.mxu0 0.0
    %134 = vmatpush1.msra.mxu0 0.0
    %135 = vmatprep.subr.mxu0 0.0
    %136 = vmatpush1.msra.mxu0 0.0
    %137 = vmatprep.subr.mxu0 0.0
    %138 = vmatpush1.msra.mxu0 0.0
    %139 = vmatprep.subr.mxu0 0.0
    %140 = vmatpush1.msra.mxu0 0.0
    %141 = vmatprep.subr.mxu0 0.0
    %142 = vmatpush1.msra.mxu0 0.0
    %143 = vmatprep.subr.mxu0 0.0
    %144 = vmatpush1.msra.mxu0 0.0
    %145 = vmatprep.subr.mxu0 0.0
    %146 = vmatpush1.msra.mxu0 0.0
    %147 = vmatprep.subr.mxu0 0.0
    %148 = vmatpush1.msra.mxu0 0.0
    %149 = vmatprep.subr.mxu0 0.0
    %150 = vmatpush1.msra.mxu0 0.0
    %151 = vmatprep.subr.mxu0 0.0
    %152 = vmatpush1.msra.mxu0 0.0
    %153 = vmatprep.subr.mxu0 0.0
    %154 = vmatpush1.msra.mxu0 0.0
    %155 = vmatprep.subr.mxu0 0.0
    %156 = vmatpush1.msra.mxu0 0.0
    %157 = vmatprep.mubr.f32.mxu0 0.0
    %158 = vmatmul.mubr.f32.gmra.mrb[0].mxu0 %v84
    %v159 = vpop.f32.mrb[0].mxu0
    %v160 = vadd.f32 0.0, %v159
    %v161 = vpop.f32.mrb[0].mxu0
    %162 = vmatprep.mubr.f32.mxu0 0.0
    %163 = vmatmul.mubr.f32.gmra.mrb[0].mxu0 %v87
    %v164 = vpop.f32.mrb[0].mxu0
    %v165 = vadd.f32 0.0, %v164
    %v166 = vpop.f32.mrb[0].mxu0
    %167 = vdwg.mxu0
    %v168 = vld [vmem:[%s3] sm:$0x1]
    %v170 = vlaneseq
    %v171 = vshrl.u32 %v170, 7
    %v172 = vsub.s32 0, %v171
    %v173 = vrot.slane %v168, %v172
    %vm175 = vcmask 130048
    %v177 = vsel %vm175, %v77, 0
    %v180 = vsel %vm175, %v78, 0
    %182 = vmatprep.subr.mxu0 0.0
    %183 = vmatpush1.msra.mxu0 %v160
    %184 = vmatprep.subr.mxu0 0.0
    %185 = vmatpush1.msra.mxu0 %v165
    %186 = vmatprep.subr.mxu0 0.0
    %187 = vmatpush1.msra.mxu0 0.0
    %188 = vmatprep.subr.mxu0 0.0
    %189 = vmatpush1.msra.mxu0 0.0
    %190 = vmatprep.subr.mxu0 0.0
    %191 = vmatpush1.msra.mxu0 0.0
    %192 = vmatprep.subr.mxu0 0.0
    %193 = vmatpush1.msra.mxu0 0.0
    %194 = vmatprep.subr.mxu0 0.0
    %195 = vmatpush1.msra.mxu0 0.0
    %196 = vmatprep.subr.mxu0 0.0
    %197 = vmatpush1.msra.mxu0 0.0
    %198 = vmatprep.subr.mxu0 0.0
    %199 = vmatpush1.msra.mxu0 0.0
    %200 = vmatprep.subr.mxu0 0.0
    %201 = vmatpush1.msra.mxu0 0.0
    %202 = vmatprep.subr.mxu0 0.0
    %203 = vmatpush1.msra.mxu0 0.0
    %204 = vmatprep.subr.mxu0 0.0
    %205 = vmatpush1.msra.mxu0 0.0
    %206 = vmatprep.subr.mxu0 0.0
    %207 = vmatpush1.msra.mxu0 0.0
    %208 = vmatprep.subr.mxu0 0.0
    %209 = vmatpush1.msra.mxu0 0.0
    %210 = vmatprep.subr.mxu0 0.0
    %211 = vmatpush1.msra.mxu0 0.0
    %212 = vmatprep.subr.mxu0 0.0
    %213 = vmatpush1.msra.mxu0 0.0
    %214 = vmatprep.subr.mxu0 0.0
    %215 = vmatpush1.msra.mxu0 0.0
    %216 = vmatprep.subr.mxu0 0.0
    %217 = vmatpush1.msra.mxu0 0.0
    %218 = vmatprep.subr.mxu0 0.0
    %219 = vmatpush1.msra.mxu0 0.0
    %220 = vmatprep.subr.mxu0 0.0
    %221 = vmatpush1.msra.mxu0 0.0
    %222 = vmatprep.subr.mxu0 0.0
    %223 = vmatpush1.msra.mxu0 0.0
    %224 = vmatprep.subr.mxu0 0.0
    %225 = vmatpush1.msra.mxu0 0.0
    %226 = vmatprep.subr.mxu0 0.0
    %227 = vmatpush1.msra.mxu0 0.0
    %228 = vmatprep.subr.mxu0 0.0
    %229 = vmatpush1.msra.mxu0 0.0
    %230 = vmatprep.subr.mxu0 0.0
    %231 = vmatpush1.msra.mxu0 0.0
    %232 = vmatprep.subr.mxu0 0.0
    %233 = vmatpush1.msra.mxu0 0.0
    %234 = vmatprep.subr.mxu0 0.0
    %235 = vmatpush1.msra.mxu0 0.0
    %236 = vmatprep.subr.mxu0 0.0
    %237 = vmatpush1.msra.mxu0 0.0
    %238 = vmatprep.subr.mxu0 0.0
    %239 = vmatpush1.msra.mxu0 0.0
    %240 = vmatprep.subr.mxu0 0.0
    %241 = vmatpush1.msra.mxu0 0.0
    %242 = vmatprep.subr.mxu0 0.0
    %243 = vmatpush1.msra.mxu0 0.0
    %244 = vmatprep.subr.mxu0 0.0
    %245 = vmatpush1.msra.mxu0 0.0
    %246 = vmatprep.mubr.f32.mxu0 0.0
    %247 = vmatmul.mubr.f32.gmra.mrb[0].mxu0 %v177
    %v248 = vpop.f32.mrb[0].mxu0
    %v249 = vadd.f32 %v173, %v248
    %v250 = vpop.f32.mrb[0].mxu0
    %251 = vmatprep.mubr.f32.mxu0 0.0
    %252 = vmatmul.mubr.f32.gmra.mrb[0].mxu0 %v180
    %v253 = vpop.f32.mrb[0].mxu0
    %v254 = vadd.f32 %v173, %v253
    %v255 = vpop.f32.mrb[0].mxu0
    %256 = vdwg.mxu0
    %v257 = vmax.f32 %v249, 0.0
    %v258 = vmax.f32 %v254, 0.0
    %v259 = vld [vmem:[#allocation2] sm:$0xff]
    %v260 = vld [vmem:[#allocation2 + $0x8] sm:$0xff]
    %v261 = vld [vmem:[#allocation2 + $0x10] sm:$0xff]
    %v262 = vld [vmem:[#allocation2 + $0x18] sm:$0xff]
    %v263 = vld [vmem:[#allocation2 + $0x20] sm:$0xff]
    %v264 = vld [vmem:[#allocation2 + $0x28] sm:$0xff]
    %v265 = vld [vmem:[#allocation2 + $0x30] sm:$0xff]
    %v266 = vld [vmem:[#allocation2 + $0x38] sm:$0xff]
    %v267 = vld [vmem:[#allocation2 + $0x40] sm:$0xff]
    %v268 = vld [vmem:[#allocation2 + $0x48] sm:$0xff]
    %v269 = vld [vmem:[#allocation2 + $0x50] sm:$0xff]
    %v270 = vld [vmem:[#allocation2 + $0x58] sm:$0xff]
    %v271 = vld [vmem:[#allocation2 + $0x60] sm:$0xff]
    %v272 = vld [vmem:[#allocation2 + $0x68] sm:$0xff]
    %v273 = vld [vmem:[#allocation2 + $0x70] sm:$0xff]
    %v274 = vld [vmem:[#allocation2 + $0x78] sm:$0xff]
    %275 = vmatprep.subr.mxu0 0.0
    %276 = vmatpush1.msra.mxu0 %v259
    %277 = vmatprep.subr.mxu0 0.0
    %278 = vmatpush1.msra.mxu0 %v260
    %279 = vmatprep.subr.mxu0 0.0
    %280 = vmatpush1.msra.mxu0 %v261
    %281 = vmatprep.subr.mxu0 0.0
    %282 = vmatpush1.msra.mxu0 %v262
    %283 = vmatprep.subr.mxu0 0.0
    %284 = vmatpush1.msra.mxu0 %v263
    %285 = vmatprep.subr.mxu0 0.0
    %286 = vmatpush1.msra.mxu0 %v264
    %287 = vmatprep.subr.mxu0 0.0
    %288 = vmatpush1.msra.mxu0 %v265
    %289 = vmatprep.subr.mxu0 0.0
    %290 = vmatpush1.msra.mxu0 %v266
    %291 = vmatprep.subr.mxu0 0.0
    %292 = vmatpush1.msra.mxu0 %v267
    %293 = vmatprep.subr.mxu0 0.0
    %294 = vmatpush1.msra.mxu0 %v268
    %295 = vmatprep.subr.mxu0 0.0
    %296 = vmatpush1.msra.mxu0 %v269
    %297 = vmatprep.subr.mxu0 0.0
    %298 = vmatpush1.msra.mxu0 %v270
    %299 = vmatprep.subr.mxu0 0.0
    %300 = vmatpush1.msra.mxu0 %v271
    %301 = vmatprep.subr.mxu0 0.0
    %302 = vmatpush1.msra.mxu0 %v272
    %303 = vmatprep.subr.mxu0 0.0
    %304 = vmatpush1.msra.mxu0 %v273
    %305 = vmatprep.subr.mxu0 0.0
    %306 = vmatpush1.msra.mxu0 %v274
    %307 = vmatprep.subr.mxu0 0.0
    %308 = vmatpush1.msra.mxu0 0.0
    %309 = vmatprep.subr.mxu0 0.0
    %310 = vmatpush1.msra.mxu0 0.0
    %311 = vmatprep.subr.mxu0 0.0
    %312 = vmatpush1.msra.mxu0 0.0
    %313 = vmatprep.subr.mxu0 0.0
    %314 = vmatpush1.msra.mxu0 0.0
    %315 = vmatprep.subr.mxu0 0.0
    %316 = vmatpush1.msra.mxu0 0.0
    %317 = vmatprep.subr.mxu0 0.0
    %318 = vmatpush1.msra.mxu0 0.0
    %319 = vmatprep.subr.mxu0 0.0
    %320 = vmatpush1.msra.mxu0 0.0
    %321 = vmatprep.subr.mxu0 0.0
    %322 = vmatpush1.msra.mxu0 0.0
    %323 = vmatprep.subr.mxu0 0.0
    %324 = vmatpush1.msra.mxu0 0.0
    %325 = vmatprep.subr.mxu0 0.0
    %326 = vmatpush1.msra.mxu0 0.0
    %327 = vmatprep.subr.mxu0 0.0
    %328 = vmatpush1.msra.mxu0 0.0
    %329 = vmatprep.subr.mxu0 0.0
    %330 = vmatpush1.msra.mxu0 0.0
    %331 = vmatprep.subr.mxu0 0.0
    %332 = vmatpush1.msra.mxu0 0.0
    %333 = vmatprep.subr.mxu0 0.0
    %334 = vmatpush1.msra.mxu0 0.0
    %335 = vmatprep.subr.mxu0 0.0
    %336 = vmatpush1.msra.mxu0 0.0
    %337 = vmatprep.subr.mxu0 0.0
    %338 = vmatpush1.msra.mxu0 0.0
    %339 = vmatprep.mubr.f32.mxu0 0.0
    %340 = vmatmul.mubr.f32.gmra.mrb[0].mxu0 %v257
    %v341 = vpop.f32.mrb[0].mxu0
    %v342 = vadd.f32 0.0, %v341
    %v343 = vpop.f32.mrb[0].mxu0
    %344 = vmatprep.mubr.f32.mxu0 0.0
    %345 = vmatmul.mubr.f32.gmra.mrb[0].mxu0 %v258
    %v346 = vpop.f32.mrb[0].mxu0
    %v347 = vadd.f32 0.0, %v346
    %v348 = vpop.f32.mrb[0].mxu0
    %349 = vdwg.mxu0
    %v350 = vld [vmem:[%s5] sm:$0x1]
    %v352 = vlaneseq
    %v353 = vshrl.u32 %v352, 7
    %v354 = vsub.s32 0, %v353
    %v355 = vrot.slane %v350, %v354
    %357 = vmatprep.subr.mxu0 0.0
    %358 = vmatpush1.msra.mxu0 %v342
    %359 = vmatprep.subr.mxu0 0.0
    %360 = vmatpush1.msra.mxu0 %v347
    %361 = vmatprep.subr.mxu0 0.0
    %362 = vmatpush1.msra.mxu0 0.0
    %363 = vmatprep.subr.mxu0 0.0
    %364 = vmatpush1.msra.mxu0 0.0
    %365 = vmatprep.subr.mxu0 0.0
    %366 = vmatpush1.msra.mxu0 0.0
    %367 = vmatprep.subr.mxu0 0.0
    %368 = vmatpush1.msra.mxu0 0.0
    %369 = vmatprep.subr.mxu0 0.0
    %370 = vmatpush1.msra.mxu0 0.0
    %371 = vmatprep.subr.mxu0 0.0
    %372 = vmatpush1.msra.mxu0 0.0
    %373 = vmatprep.subr.mxu0 0.0
    %374 = vmatpush1.msra.mxu0 0.0
    %375 = vmatprep.subr.mxu0 0.0
    %376 = vmatpush1.msra.mxu0 0.0
    %377 = vmatprep.subr.mxu0 0.0
    %378 = vmatpush1.msra.mxu0 0.0
    %379 = vmatprep.subr.mxu0 0.0
    %380 = vmatpush1.msra.mxu0 0.0
    %381 = vmatprep.subr.mxu0 0.0
    %382 = vmatpush1.msra.mxu0 0.0
    %383 = vmatprep.subr.mxu0 0.0
    %384 = vmatpush1.msra.mxu0 0.0
    %385 = vmatprep.subr.mxu0 0.0
    %386 = vmatpush1.msra.mxu0 0.0
    %387 = vmatprep.subr.mxu0 0.0
    %388 = vmatpush1.msra.mxu0 0.0
    %389 = vmatprep.subr.mxu0 0.0
    %390 = vmatpush1.msra.mxu0 0.0
    %391 = vmatprep.subr.mxu0 0.0
    %392 = vmatpush1.msra.mxu0 0.0
    %393 = vmatprep.subr.mxu0 0.0
    %394 = vmatpush1.msra.mxu0 0.0
    %395 = vmatprep.subr.mxu0 0.0
    %396 = vmatpush1.msra.mxu0 0.0
    %397 = vmatprep.subr.mxu0 0.0
    %398 = vmatpush1.msra.mxu0 0.0
    %399 = vmatprep.subr.mxu0 0.0
    %400 = vmatpush1.msra.mxu0 0.0
    %401 = vmatprep.subr.mxu0 0.0
    %402 = vmatpush1.msra.mxu0 0.0
    %403 = vmatprep.subr.mxu0 0.0
    %404 = vmatpush1.msra.mxu0 0.0
    %405 = vmatprep.subr.mxu0 0.0
    %406 = vmatpush1.msra.mxu0 0.0
    %407 = vmatprep.subr.mxu0 0.0
    %408 = vmatpush1.msra.mxu0 0.0
    %409 = vmatprep.subr.mxu0 0.0
    %410 = vmatpush1.msra.mxu0 0.0
    %411 = vmatprep.subr.mxu0 0.0
    %412 = vmatpush1.msra.mxu0 0.0
    %413 = vmatprep.subr.mxu0 0.0
    %414 = vmatpush1.msra.mxu0 0.0
    %415 = vmatprep.subr.mxu0 0.0
    %416 = vmatpush1.msra.mxu0 0.0
    %417 = vmatprep.subr.mxu0 0.0
    %418 = vmatpush1.msra.mxu0 0.0
    %419 = vmatprep.subr.mxu0 0.0
    %420 = vmatpush1.msra.mxu0 0.0
    %421 = vmatprep.mubr.f32.mxu0 0.0
    %422 = vmatmul.mubr.f32.gmra.mrb[0].mxu0 %v177
    %v423 = vpop.f32.mrb[0].mxu0
    %v424 = vadd.f32 %v355, %v423
    %v425 = vpop.f32.mrb[0].mxu0
    %426 = vmatprep.mubr.f32.mxu0 0.0
    %427 = vmatmul.mubr.f32.gmra.mrb[0].mxu0 %v180
    %v428 = vpop.f32.mrb[0].mxu0
    %v429 = vadd.f32 %v355, %v428
    %v430 = vpop.f32.mrb[0].mxu0
    %431 = vdwg.mxu0
    %v432 = vmax.f32 %v424, 0.0
    %v433 = vmax.f32 %v429, 0.0
    %v434 = vld [vmem:[#allocation5] sm:$0xff]
    %v435 = vld [vmem:[#allocation5 + $0x8] sm:$0xff]
    %v436 = vld [vmem:[#allocation5 + $0x10] sm:$0xff]
    %v437 = vld [vmem:[#allocation5 + $0x18] sm:$0xff]
    %v438 = vld [vmem:[#allocation5 + $0x20] sm:$0xff]
    %v439 = vld [vmem:[#allocation5 + $0x28] sm:$0xff]
    %v440 = vld [vmem:[#allocation5 + $0x30] sm:$0xff]
    %v441 = vld [vmem:[#allocation5 + $0x38] sm:$0xff]
    %v442 = vld [vmem:[#allocation5 + $0x40] sm:$0xff]
    %v443 = vld [vmem:[#allocation5 + $0x48] sm:$0xff]
    %v444 = vld [vmem:[#allocation5 + $0x50] sm:$0xff]
    %v445 = vld [vmem:[#allocation5 + $0x58] sm:$0xff]
    %v446 = vld [vmem:[#allocation5 + $0x60] sm:$0xff]
    %v447 = vld [vmem:[#allocation5 + $0x68] sm:$0xff]
    %v448 = vld [vmem:[#allocation5 + $0x70] sm:$0xff]
    %v449 = vld [vmem:[#allocation5 + $0x78] sm:$0xff]
    %450 = vmatprep.subr.mxu0 0.0
    %451 = vmatpush1.msra.mxu0 %v434
    %452 = vmatprep.subr.mxu0 0.0
    %453 = vmatpush1.msra.mxu0 %v435
    %454 = vmatprep.subr.mxu0 0.0
    %455 = vmatpush1.msra.mxu0 %v436
    %456 = vmatprep.subr.mxu0 0.0
    %457 = vmatpush1.msra.mxu0 %v437
    %458 = vmatprep.subr.mxu0 0.0
    %459 = vmatpush1.msra.mxu0 %v438
    %460 = vmatprep.subr.mxu0 0.0
    %461 = vmatpush1.msra.mxu0 %v439
    %462 = vmatprep.subr.mxu0 0.0
    %463 = vmatpush1.msra.mxu0 %v440
    %464 = vmatprep.subr.mxu0 0.0
    %465 = vmatpush1.msra.mxu0 %v441
    %466 = vmatprep.subr.mxu0 0.0
    %467 = vmatpush1.msra.mxu0 %v442
    %468 = vmatprep.subr.mxu0 0.0
    %469 = vmatpush1.msra.mxu0 %v443
    %470 = vmatprep.subr.mxu0 0.0
    %471 = vmatpush1.msra.mxu0 %v444
    %472 = vmatprep.subr.mxu0 0.0
    %473 = vmatpush1.msra.mxu0 %v445
    %474 = vmatprep.subr.mxu0 0.0
    %475 = vmatpush1.msra.mxu0 %v446
    %476 = vmatprep.subr.mxu0 0.0
    %477 = vmatpush1.msra.mxu0 %v447
    %478 = vmatprep.subr.mxu0 0.0
    %479 = vmatpush1.msra.mxu0 %v448
    %480 = vmatprep.subr.mxu0 0.0
    %481 = vmatpush1.msra.mxu0 %v449
    %482 = vmatprep.subr.mxu0 0.0
    %483 = vmatpush1.msra.mxu0 0.0
    %484 = vmatprep.subr.mxu0 0.0
    %485 = vmatpush1.msra.mxu0 0.0
    %486 = vmatprep.subr.mxu0 0.0
    %487 = vmatpush1.msra.mxu0 0.0
    %488 = vmatprep.subr.mxu0 0.0
    %489 = vmatpush1.msra.mxu0 0.0
    %490 = vmatprep.subr.mxu0 0.0
    %491 = vmatpush1.msra.mxu0 0.0
    %492 = vmatprep.subr.mxu0 0.0
    %493 = vmatpush1.msra.mxu0 0.0
    %494 = vmatprep.subr.mxu0 0.0
    %495 = vmatpush1.msra.mxu0 0.0
    %496 = vmatprep.subr.mxu0 0.0
    %497 = vmatpush1.msra.mxu0 0.0
    %498 = vmatprep.subr.mxu0 0.0
    %499 = vmatpush1.msra.mxu0 0.0
    %500 = vmatprep.subr.mxu0 0.0
    %501 = vmatpush1.msra.mxu0 0.0
    %502 = vmatprep.subr.mxu0 0.0
    %503 = vmatpush1.msra.mxu0 0.0
    %504 = vmatprep.subr.mxu0 0.0
    %505 = vmatpush1.msra.mxu0 0.0
    %506 = vmatprep.subr.mxu0 0.0
    %507 = vmatpush1.msra.mxu0 0.0
    %508 = vmatprep.subr.mxu0 0.0
    %509 = vmatpush1.msra.mxu0 0.0
    %510 = vmatprep.subr.mxu0 0.0
    %511 = vmatpush1.msra.mxu0 0.0
    %512 = vmatprep.subr.mxu0 0.0
    %513 = vmatpush1.msra.mxu0 0.0
    %514 = vmatprep.mubr.f32.mxu0 0.0
    %515 = vmatmul.mubr.f32.gmra.mrb[0].mxu0 %v432
    %v516 = vpop.f32.mrb[0].mxu0
    %v517 = vadd.f32 0.0, %v516
    %v518 = vpop.f32.mrb[0].mxu0
    %519 = vmatprep.mubr.f32.mxu0 0.0
    %520 = vmatmul.mubr.f32.gmra.mrb[0].mxu0 %v433
    %v521 = vpop.f32.mrb[0].mxu0
    %v522 = vadd.f32 0.0, %v521
    %v523 = vpop.f32.mrb[0].mxu0
    %524 = vdwg.mxu0
    %v525 = vld [vmem:[%s7] sm:$0x1]
    %v527 = vlaneseq
    %v528 = vshrl.u32 %v527, 7
    %v529 = vsub.s32 0, %v528
    %v530 = vrot.slane %v525, %v529
    %532 = vmatprep.subr.mxu0 0.0
    %533 = vmatpush1.msra.mxu0 %v517
    %534 = vmatprep.subr.mxu0 0.0
    %535 = vmatpush1.msra.mxu0 %v522
    %536 = vmatprep.subr.mxu0 0.0
    %537 = vmatpush1.msra.mxu0 0.0
    %538 = vmatprep.subr.mxu0 0.0
    %539 = vmatpush1.msra.mxu0 0.0
    %540 = vmatprep.subr.mxu0 0.0
    %541 = vmatpush1.msra.mxu0 0.0
    %542 = vmatprep.subr.mxu0 0.0
    %543 = vmatpush1.msra.mxu0 0.0
    %544 = vmatprep.subr.mxu0 0.0
    %545 = vmatpush1.msra.mxu0 0.0
    %546 = vmatprep.subr.mxu0 0.0
    %547 = vmatpush1.msra.mxu0 0.0
    %548 = vmatprep.subr.mxu0 0.0
    %549 = vmatpush1.msra.mxu0 0.0
    %550 = vmatprep.subr.mxu0 0.0
    %551 = vmatpush1.msra.mxu0 0.0
    %552 = vmatprep.subr.mxu0 0.0
    %553 = vmatpush1.msra.mxu0 0.0
    %554 = vmatprep.subr.mxu0 0.0
    %555 = vmatpush1.msra.mxu0 0.0
    %556 = vmatprep.subr.mxu0 0.0
    %557 = vmatpush1.msra.mxu0 0.0
    %558 = vmatprep.subr.mxu0 0.0
    %559 = vmatpush1.msra.mxu0 0.0
    %560 = vmatprep.subr.mxu0 0.0
    %561 = vmatpush1.msra.mxu0 0.0
    %562 = vmatprep.subr.mxu0 0.0
    %563 = vmatpush1.msra.mxu0 0.0
    %564 = vmatprep.subr.mxu0 0.0
    %565 = vmatpush1.msra.mxu0 0.0
    %566 = vmatprep.subr.mxu0 0.0
    %567 = vmatpush1.msra.mxu0 0.0
    %568 = vmatprep.subr.mxu0 0.0
    %569 = vmatpush1.msra.mxu0 0.0
    %570 = vmatprep.subr.mxu0 0.0
    %571 = vmatpush1.msra.mxu0 0.0
    %572 = vmatprep.subr.mxu0 0.0
    %573 = vmatpush1.msra.mxu0 0.0
    %574 = vmatprep.subr.mxu0 0.0
    %575 = vmatpush1.msra.mxu0 0.0
    %576 = vmatprep.subr.mxu0 0.0
    %577 = vmatpush1.msra.mxu0 0.0
    %578 = vmatprep.subr.mxu0 0.0
    %579 = vmatpush1.msra.mxu0 0.0
    %580 = vmatprep.subr.mxu0 0.0
    %581 = vmatpush1.msra.mxu0 0.0
    %582 = vmatprep.subr.mxu0 0.0
    %583 = vmatpush1.msra.mxu0 0.0
    %584 = vmatprep.subr.mxu0 0.0
    %585 = vmatpush1.msra.mxu0 0.0
    %586 = vmatprep.subr.mxu0 0.0
    %587 = vmatpush1.msra.mxu0 0.0
    %588 = vmatprep.subr.mxu0 0.0
    %589 = vmatpush1.msra.mxu0 0.0
    %590 = vmatprep.subr.mxu0 0.0
    %591 = vmatpush1.msra.mxu0 0.0
    %592 = vmatprep.subr.mxu0 0.0
    %593 = vmatpush1.msra.mxu0 0.0
    %594 = vmatprep.subr.mxu0 0.0
    %595 = vmatpush1.msra.mxu0 0.0
    %596 = vmatprep.mubr.f32.mxu0 0.0
    %597 = vmatmul.mubr.f32.gmra.mrb[0].mxu0 %v177
    %v598 = vpop.f32.mrb[0].mxu0
    %v599 = vadd.f32 %v530, %v598
    %v600 = vpop.f32.mrb[0].mxu0
    %601 = vmatprep.mubr.f32.mxu0 0.0
    %602 = vmatmul.mubr.f32.gmra.mrb[0].mxu0 %v180
    %v603 = vpop.f32.mrb[0].mxu0
    %v604 = vadd.f32 %v530, %v603
    %v605 = vpop.f32.mrb[0].mxu0
    %606 = vdwg.mxu0
    %v607 = vmax.f32 %v599, 0.0
    %v608 = vmax.f32 %v604, 0.0
    %v609 = vadd.f32 %v607, %v608
    %v610 = vrot.slane %v609, 4
    %v611 = vadd.f32 %v609, %v610
    %v612 = vrot.slane %v611, 2
    %v613 = vadd.f32 %v611, %v612
    %v614 = vrot.slane %v613, 1
    %v615 = vadd.f32 %v613, %v614
    %v616 = vrcp.pop 16.0
    %v617 = vmul.f32 %v615, %v616
    %v618 = vld [vmem:[#allocation7] sm:$0xff]
    %v619 = vld [vmem:[#allocation7 + $0x8] sm:$0xff]
    %v620 = vld [vmem:[#allocation7 + $0x10] sm:$0xff]
    %v621 = vld [vmem:[#allocation7 + $0x18] sm:$0xff]
    %v622 = vld [vmem:[#allocation7 + $0x20] sm:$0xff]
    %v623 = vld [vmem:[#allocation7 + $0x28] sm:$0xff]
    %v624 = vld [vmem:[#allocation7 + $0x30] sm:$0xff]
    %v625 = vld [vmem:[#allocation7 + $0x38] sm:$0xff]
    %v626 = vld [vmem:[#allocation7 + $0x40] sm:$0xff]
    %v627 = vld [vmem:[#allocation7 + $0x48] sm:$0xff]
    %v628 = vld [vmem:[#allocation7 + $0x50] sm:$0xff]
    %v629 = vld [vmem:[#allocation7 + $0x58] sm:$0xff]
    %v630 = vld [vmem:[#allocation7 + $0x60] sm:$0xff]
    %v631 = vld [vmem:[#allocation7 + $0x68] sm:$0xff]
    %v632 = vld [vmem:[#allocation7 + $0x70] sm:$0xff]
    %v633 = vld [vmem:[#allocation7 + $0x78] sm:$0xff]
    %v634 = vld [vmem:[%s9] sm:$0x1]
    %635 = vmatprep.subr.mxu0 0.0
    %636 = vmatpush1.msra.mxu0 %v618
    %637 = vmatprep.subr.mxu0 0.0
    %638 = vmatpush1.msra.mxu0 %v619
    %639 = vmatprep.subr.mxu0 0.0
    %640 = vmatpush1.msra.mxu0 %v620
    %641 = vmatprep.subr.mxu0 0.0
    %642 = vmatpush1.msra.mxu0 %v621
    %643 = vmatprep.subr.mxu0 0.0
    %644 = vmatpush1.msra.mxu0 %v622
    %645 = vmatprep.subr.mxu0 0.0
    %646 = vmatpush1.msra.mxu0 %v623
    %647 = vmatprep.subr.mxu0 0.0
    %648 = vmatpush1.msra.mxu0 %v624
    %649 = vmatprep.subr.mxu0 0.0
    %650 = vmatpush1.msra.mxu0 %v625
    %651 = vmatprep.subr.mxu0 0.0
    %652 = vmatpush1.msra.mxu0 %v626
    %653 = vmatprep.subr.mxu0 0.0
    %654 = vmatpush1.msra.mxu0 %v627
    %655 = vmatprep.subr.mxu0 0.0
    %656 = vmatpush1.msra.mxu0 %v628
    %657 = vmatprep.subr.mxu0 0.0
    %658 = vmatpush1.msra.mxu0 %v629
    %659 = vmatprep.subr.mxu0 0.0
    %660 = vmatpush1.msra.mxu0 %v630
    %661 = vmatprep.subr.mxu0 0.0
    %662 = vmatpush1.msra.mxu0 %v631
    %663 = vmatprep.subr.mxu0 0.0
    %664 = vmatpush1.msra.mxu0 %v632
    %665 = vmatprep.subr.mxu0 0.0
    %666 = vmatpush1.msra.mxu0 %v633
    %667 = vmatprep.subr.mxu0 0.0
    %668 = vmatpush1.msra.mxu0 0.0
    %669 = vmatprep.subr.mxu0 0.0
    %670 = vmatpush1.msra.mxu0 0.0
    %671 = vmatprep.subr.mxu0 0.0
    %672 = vmatpush1.msra.mxu0 0.0
    %673 = vmatprep.subr.mxu0 0.0
    %674 = vmatpush1.msra.mxu0 0.0
    %675 = vmatprep.subr.mxu0 0.0
    %676 = vmatpush1.msra.mxu0 0.0
    %677 = vmatprep.subr.mxu0 0.0
    %678 = vmatpush1.msra.mxu0 0.0
    %679 = vmatprep.subr.mxu0 0.0
    %680 = vmatpush1.msra.mxu0 0.0
    %681 = vmatprep.subr.mxu0 0.0
    %682 = vmatpush1.msra.mxu0 0.0
    %683 = vmatprep.subr.mxu0 0.0
    %684 = vmatpush1.msra.mxu0 0.0
    %685 = vmatprep.subr.mxu0 0.0
    %686 = vmatpush1.msra.mxu0 0.0
    %687 = vmatprep.subr.mxu0 0.0
    %688 = vmatpush1.msra.mxu0 0.0
    %689 = vmatprep.subr.mxu0 0.0
    %690 = vmatpush1.msra.mxu0 0.0
    %691 = vmatprep.subr.mxu0 0.0
    %692 = vmatpush1.msra.mxu0 0.0
    %693 = vmatprep.subr.mxu0 0.0
    %694 = vmatpush1.msra.mxu0 0.0
    %695 = vmatprep.subr.mxu0 0.0
    %696 = vmatpush1.msra.mxu0 0.0
    %697 = vmatprep.subr.mxu0 0.0
    %698 = vmatpush1.msra.mxu0 0.0
    %699 = vmatprep.mubr.f32.mxu0 0.0
    %700 = vmatmul.mubr.f32.gmra.mrb[0].mxu0 %v617
    %v701 = vpop.f32.mrb[0].mxu0
    %v702 = vadd.f32 %v634, %v701
    %v703 = vpop.f32.mrb[0].mxu0
    %704 = vdwg.mxu0
    %v705 = vlaneseq
    %v706 = vand.u32 %v705, 127
    %vm707 = vcmp.lt.s32.totalorder %v706, 2
    %v708 = vsel %vm707, %v702, -1e+30
    %vm709 = vcmask 1040384
    %v710 = vsel %vm709, %v708, -inf
    %711 = vmax.xlane.f32.xlu0 %v710
    %v712 = vpop.xlane.xlu0 %711
    %v713 = vsub.f32 %v708, %v712
    %v714 = vmul.f32 %v713, 1.442695
    %v715 = vpow.pop %v714
    %v716 = vsel %vm707, %v715, 0.0
    %v717 = vsel %vm709, %v716, 0.0
    %718 = vadd.xlane.f32.xlu0 %v717
    %v719 = vpop.xlane.xlu0 %718
    %v720 = vlog2.pop %v719
    %v721 = vmul.f32 %v720, 0.6931472
    %v722 = vsub.f32 %v713, %v721
    %v723 = vsel %vm707, %v722, 0.0
    %724 = vst [vmem:[#allocation8] sm:$0x1] %v723
    // Predicated region
    $region54: #{gcn_forward.1} parent=1 // pred_check
      _
    $region55: #{gcn_forward.1} parent=1 // pred_check_branch
      %726 = sbr.rel (0) target = $region57
    $region56: #{gcn_forward.1} parent=1 // pred_region
      %s728 = ssub.s32 16, 16
      %729 = vsyncadd [#allocation4], %s728
      %s731 = sshll.u32 [#allocation8], 4
      %s732 = int_to_ptr.vmem [resolvable:$true] %s731
      %734 = dma.vmem_to_hbm [thread:$0]  %s732, 16, %s10, [#allocation4]
    $region57: #{gcn_forward.1} parent=1 // pred_fallthru
      _
    // Predicated region
    $region58: #{gcn_forward.1} parent=1 // pred_check
      _
    $region59: #{gcn_forward.1} parent=1 // pred_check_branch
      %736 = sbr.rel (0) target = $region61
    $region60: #{gcn_forward.1} parent=1 // pred_region
      %737 = dma.done [#allocation4], 16
    $region61: #{gcn_forward.1} parent=1 // pred_fallthru
      _
    %738 = vsyncpa [#allocation3], 1
    %739 = vsyncpa [#allocation6], 1
    %740 = vsyncpa [#allocation4], 1

</llo_original>
